<compile_context>
chip_gen: v5e
topology: v5e:2x2
jax: 0.10.0
libtpu: 0.0.40
codegen_flags: <defaults>
</compile_context>

<pallas_src>
import numpy as np
import jax
import jax.numpy as jnp
from jax.experimental import pallas as pl
from jax.experimental.pallas import tpu as pltpu


# --------------------------------------------------------------------------
# Pallas kernel: one grid step = (one batch element, one tile of query tokens)
# All tensors are channel-major: (channels, tokens).
# --------------------------------------------------------------------------
def oab_kernel(x_ref, p_ref,
               wp1_ref, bp1_ref, wp2_ref, bp2_ref,      # f_pixel (scale folded)
               wo1_ref, bo1_ref, wo2_ref, bo2_ref,      # f_object
               wd_ref, bd_ref,                          # f_down
               wu_ref, bu_ref,                          # f_up
               o_ref):
    dt = x_ref.dtype
    x = x_ref[0]                                        # (Cin, TQ)
    p = p_ref[0]                                        # (Cin, M)

    def affine_relu(w_ref, inp, b_ref):
        # left-multiply: y = W @ inp + b, f32 accumulation, ReLU in f32.
        y = jnp.dot(w_ref[...], inp, preferred_element_type=jnp.float32)
        y = jnp.maximum(y + b_ref[...].astype(jnp.float32), 0.0)
        return y.astype(dt)

    # query path (attention scale Kc^-0.5 already folded into wp2/bp2)
    q = affine_relu(wp2_ref, affine_relu(wp1_ref, x, bp1_ref), bp2_ref)   # (Kc, TQ)
    # key / value paths (proxy is tiny; recompute per tile is cheap)
    k = affine_relu(wo2_ref, affine_relu(wo1_ref, p, bo1_ref), bo2_ref)   # (Kc, M)
    v = affine_relu(wd_ref, p, bd_ref)                                    # (Kc, M)

    # sim_t[m, n] = sum_c k[c, m] * q[c, n]  (contraction over Kc, dim 0 of both)
    sim = jax.lax.dot_general(k, q, (((0,), (0,)), ((), ())),
                              preferred_element_type=jnp.float32)         # (M, TQ) f32

    # numerically stable softmax over the proxy axis (axis 0); reciprocal on EUP
    sim = sim - jnp.max(sim, axis=0, keepdims=True)
    pexp = jnp.exp(sim)
    inv = pl.reciprocal(jnp.sum(pexp, axis=0, keepdims=True), approx=True)
    attn = (pexp * inv).astype(dt)                                        # (M, TQ)

    # context + output projection (f_up); lane-dense (Cin, TQ) store
    ctx = jnp.dot(v, attn, preferred_element_type=jnp.float32).astype(dt)  # (Kc, TQ)
    out = jnp.dot(wu_ref[...], ctx, preferred_element_type=jnp.float32)    # (Cin, TQ)
    out = jnp.maximum(out + bu_ref[...].astype(jnp.float32), 0.0)
    o_ref[0] = out.astype(o_ref.dtype)


def object_attention_cm(x_cm, p_cm, fused, *, tile_q=None):
    """x_cm: (B, Cin, HW) channel-major; p_cm: (B, Cin, M); fused: 14 affine arrays."""
    B, Cin, HW = x_cm.shape
    _, _, M = p_cm.shape
    (wp1, bp1, wp2, bp2, wo1, bo1, wo2, bo2, wd, bd, wu, bu) = fused

    if tile_q is None:
        tile_q = HW if HW <= 1024 else 1024          # big lane-dense token tiles
    assert HW % tile_q == 0 and (tile_q == HW or tile_q % 128 == 0)
    grid = (B, HW // tile_q)

    def rep(arr):
        nd = arr.ndim
        return pl.BlockSpec(arr.shape, lambda *_args, _nd=nd: (0,) * _nd)

    return pl.pallas_call(
        oab_kernel,
        out_shape=jax.ShapeDtypeStruct((B, Cin, HW), x_cm.dtype),
        grid_spec=pltpu.PrefetchScalarGridSpec(
            num_scalar_prefetch=0,
            grid=grid,
            in_specs=[
                pl.BlockSpec((1, Cin, tile_q), lambda b, t: (b, 0, t)),   # x tokens
                pl.BlockSpec((1, Cin, M), lambda b, t: (b, 0, 0)),        # proxy tokens
                rep(wp1), rep(bp1), rep(wp2), rep(bp2),
                rep(wo1), rep(bo1), rep(wo2), rep(bo2),
                rep(wd), rep(bd), rep(wu), rep(bu),
            ],
            out_specs=pl.BlockSpec((1, Cin, tile_q), lambda b, t: (b, 0, t)),
        ),
        compiler_params=pltpu.CompilerParams(
            dimension_semantics=("parallel", "parallel")),
    )(x_cm, p_cm, wp1, bp1, wp2, bp2, wo1, bo1, wo2, bo2, wd, bd, wu, bu)


# --------------------------------------------------------------------------
# Wrapper glue: NCHW -> channel-major tokens (pure reshape, no transpose),
# Conv1x1+BN(eval) fusion, attention-scale folding.
# --------------------------------------------------------------------------
def fuse_conv_bn(w, b, gamma, beta, mean, var, eps=1e-5):
    """(Cout,Cin,1,1) conv + BN(eval) -> (W: (Cout,Cin), bias: (Cout,1)) for y = W @ x + b."""
    w2 = w[:, :, 0, 0]                                   # (Cout, Cin)
    s = gamma / jnp.sqrt(var + eps)                      # (Cout,)
    w_eff = w2 * s[:, None]                              # (Cout, Cin)
    b_eff = (b - mean) * s + beta                        # (Cout,)
    return w_eff, b_eff[:, None]


def fuse_all(P, key_channels, eps=1e-5):
    attn_scale = key_channels ** (-0.5)
    wp1, bp1 = fuse_conv_bn(*P["pixel1"], eps)
    wp2, bp2 = fuse_conv_bn(*P["pixel2"], eps)
    wp2, bp2 = wp2 * attn_scale, bp2 * attn_scale        # fold Kc^-0.5 into query path
    wo1, bo1 = fuse_conv_bn(*P["object1"], eps)
    wo2, bo2 = fuse_conv_bn(*P["object2"], eps)
    wd, bd = fuse_conv_bn(*P["down"], eps)
    wu, bu = fuse_conv_bn(*P["up"], eps)
    return (wp1, bp1, wp2, bp2, wo1, bo1, wo2, bo2, wd, bd, wu, bu)


def object_attention_block(x_nchw, proxy_nchw, P, key_channels, tile_q=None):
    B, C, H, W = x_nchw.shape
    _, _, Mh, Mw = proxy_nchw.shape
    x_cm = x_nchw.reshape(B, C, H * W)                   # channel-major, no transpose
    p_cm = proxy_nchw.reshape(B, C, Mh * Mw)
    fused = fuse_all(P, key_channels)
    out_cm = object_attention_cm(x_cm, p_cm, fused, tile_q=tile_q)   # (B, C, HW)
    return out_cm.reshape(B, C, H, W)


# --------------------------------------------------------------------------
# Pure-JAX reference mirroring the PyTorch forward (unfused conv+BN, NCHW)
# --------------------------------------------------------------------------
def ref_forward(x, proxy, P, key_channels, eps=1e-5):
    def cbr(inp, w, b, g, be, mu, var):
        y = jnp.einsum("bchw,oc->bohw", inp, w[:, :, 0, 0]) + b[None, :, None, None]
        y = (y - mu[None, :, None, None]) / jnp.sqrt(var[None, :, None, None] + eps)
        y = y * g[None, :, None, None] + be[None, :, None, None]
        return jnp.maximum(y, 0.0)

    B, C, H, W = x.shape
    Kc = key_channels
    q = cbr(cbr(x, *P["pixel1"]), *P["pixel2"])
    k = cbr(cbr(proxy, *P["object1"]), *P["object2"])
    v = cbr(proxy, *P["down"])
    q = q.reshape(B, Kc, H * W).transpose(0, 2, 1)       # (B, HW, Kc)
    k = k.reshape(B, Kc, -1)                             # (B, Kc, M)
    v = v.reshape(B, Kc, -1).transpose(0, 2, 1)          # (B, M, Kc)
    sim = jnp.einsum("bnk,bkm->bnm", q, k) * (Kc ** -0.5)
    sim = jax.nn.softmax(sim, axis=-1)
    ctx = jnp.einsum("bnm,bmk->bnk", sim, v)             # (B, HW, Kc)
    ctx = ctx.transpose(0, 2, 1).reshape(B, Kc, H, W)
    return cbr(ctx, *P["up"])


# --------------------------------------------------------------------------
# Test harness
# --------------------------------------------------------------------------
def make_cbr_params(key, cin, cout):
    kw, kb, kg, kbt, km, kv = jax.random.split(key, 6)
    w = 0.2 * jax.random.normal(kw, (cout, cin, 1, 1), jnp.float32)
    b = 0.1 * jax.random.normal(kb, (cout,), jnp.float32)
    gamma = 1.0 + 0.1 * jax.random.normal(kg, (cout,), jnp.float32)
    beta = 0.1 * jax.random.normal(kbt, (cout,), jnp.float32)
    mean = 0.1 * jax.random.normal(km, (cout,), jnp.float32)
    var = 0.5 + jax.random.uniform(kv, (cout,), jnp.float32)
    return (w, b, gamma, beta, mean, var)


if __name__ == "__main__":
    B = 2
    in_channels = 32
    key_channels = 16
    H = W = 16               # HW = 256 query tokens
    M = 8                    # number of object/proxy regions (proxy spatial = (8, 1))

    key = jax.random.PRNGKey(0)
    (k_x, k_p, k1, k2, k3, k4, k5, k6) = jax.random.split(key, 8)

    x = jax.random.normal(k_x, (B, in_channels, H, W), dtype=jnp.float32)
    proxy = jax.random.normal(k_p, (B, in_channels, M, 1), dtype=jnp.float32)

    P = {
        "pixel1": make_cbr_params(k1, in_channels, key_channels),
        "pixel2": make_cbr_params(k2, key_channels, key_channels),
        "object1": make_cbr_params(k3, in_channels, key_channels),
        "object2": make_cbr_params(k4, key_channels, key_channels),
        "down": make_cbr_params(k5, in_channels, key_channels),
        "up": make_cbr_params(k6, key_channels, in_channels),
    }

    out = object_attention_block(x, proxy, P, key_channels)
    out = jax.block_until_ready(out)

    ref = ref_forward(x, proxy, P, key_channels)
    # approx reciprocal in the softmax denominator loosens tolerance slightly
    np.testing.assert_allclose(np.asarray(out), np.asarray(ref), rtol=5e-3, atol=5e-3)

    print("KERNEL_OK")
</pallas_src>

<mosaic_0001>
module attributes {stable_mosaic.version = 11 : i64} {
  func.func @oab_kernel(%arg0: i32, %arg1: i32, %arg2: memref<1x32x256xf32, #tpu.memory_space<vmem>>, %arg3: memref<1x32x8xf32, #tpu.memory_space<vmem>>, %arg4: memref<16x32xf32, #tpu.memory_space<vmem>>, %arg5: memref<16x1xf32, #tpu.memory_space<vmem>>, %arg6: memref<16x16xf32, #tpu.memory_space<vmem>>, %arg7: memref<16x1xf32, #tpu.memory_space<vmem>>, %arg8: memref<16x32xf32, #tpu.memory_space<vmem>>, %arg9: memref<16x1xf32, #tpu.memory_space<vmem>>, %arg10: memref<16x16xf32, #tpu.memory_space<vmem>>, %arg11: memref<16x1xf32, #tpu.memory_space<vmem>>, %arg12: memref<16x32xf32, #tpu.memory_space<vmem>>, %arg13: memref<16x1xf32, #tpu.memory_space<vmem>>, %arg14: memref<32x16xf32, #tpu.memory_space<vmem>>, %arg15: memref<32x1xf32, #tpu.memory_space<vmem>>, %arg16: memref<1x32x256xf32, #tpu.memory_space<vmem>>) attributes {dimension_semantics = [#tpu.dimension_semantics<parallel>, #tpu.dimension_semantics<parallel>], iteration_bounds = array<i64: 2, 1>, scalar_prefetch = 0 : i64, scratch_operands = 0 : i64, tpu.core_type = #tpu.core_type<tc>, window_params = [{transform_indices = @transform_0, window_bounds = array<i64: 1, 32, 256>}, {transform_indices = @transform_1, window_bounds = array<i64: 1, 32, 8>}, {pipeline_mode = #tpu.pipeline_mode<synchronous>, transform_indices = @transform_2, window_bounds = array<i64: 16, 32>}, {pipeline_mode = #tpu.pipeline_mode<synchronous>, transform_indices = @transform_3, window_bounds = array<i64: 16, 1>}, {pipeline_mode = #tpu.pipeline_mode<synchronous>, transform_indices = @transform_4, window_bounds = array<i64: 16, 16>}, {pipeline_mode = #tpu.pipeline_mode<synchronous>, transform_indices = @transform_5, window_bounds = array<i64: 16, 1>}, {pipeline_mode = #tpu.pipeline_mode<synchronous>, transform_indices = @transform_6, window_bounds = array<i64: 16, 32>}, {pipeline_mode = #tpu.pipeline_mode<synchronous>, transform_indices = @transform_7, window_bounds = array<i64: 16, 1>}, {pipeline_mode = #tpu.pipeline_mode<synchronous>, transform_indices = @transform_8, window_bounds = array<i64: 16, 16>}, {pipeline_mode = #tpu.pipeline_mode<synchronous>, transform_indices = @transform_9, window_bounds = array<i64: 16, 1>}, {pipeline_mode = #tpu.pipeline_mode<synchronous>, transform_indices = @transform_10, window_bounds = array<i64: 16, 32>}, {pipeline_mode = #tpu.pipeline_mode<synchronous>, transform_indices = @transform_11, window_bounds = array<i64: 16, 1>}, {pipeline_mode = #tpu.pipeline_mode<synchronous>, transform_indices = @transform_12, window_bounds = array<i64: 32, 16>}, {pipeline_mode = #tpu.pipeline_mode<synchronous>, transform_indices = @transform_13, window_bounds = array<i64: 32, 1>}, {transform_indices = @transform_14, window_bounds = array<i64: 1, 32, 256>}]} {
    %c0 = arith.constant 0 : index
    %c0_0 = arith.constant 0 : index
    %c0_1 = arith.constant 0 : index
    %0 = vector.load %arg2[%c0, %c0_0, %c0_1] : memref<1x32x256xf32, #tpu.memory_space<vmem>>, vector<1x32x256xf32>
    %1 = vector.shape_cast %0 : vector<1x32x256xf32> to vector<32x256xf32>
    %c0_2 = arith.constant 0 : index
    %c0_3 = arith.constant 0 : index
    %c0_4 = arith.constant 0 : index
    %2 = vector.load %arg3[%c0_2, %c0_3, %c0_4] : memref<1x32x8xf32, #tpu.memory_space<vmem>>, vector<1x32x8xf32>
    %3 = vector.shape_cast %2 : vector<1x32x8xf32> to vector<32x8xf32>
    %c0_5 = arith.constant 0 : index
    %c0_6 = arith.constant 0 : index
    %4 = vector.load %arg4[%c0_5, %c0_6] : memref<16x32xf32, #tpu.memory_space<vmem>>, vector<16x32xf32>
    %cst = arith.constant dense<0.000000e+00> : vector<16x256xf32>
    %5 = tpu.matmul %4, %1, %cst {dimension_numbers = #tpu.dot_dimension_numbers<[1], [0], [0], [1], [0, 0, 1, 1], [], []>} : vector<16x32xf32>, vector<32x256xf32>, vector<16x256xf32> -> vector<16x256xf32>
    %c0_7 = arith.constant 0 : index
    %c0_8 = arith.constant 0 : index
    %6 = vector.load %arg5[%c0_7, %c0_8] : memref<16x1xf32, #tpu.memory_space<vmem>>, vector<16x1xf32>
    %7 = vector.broadcast %6 : vector<16x1xf32> to vector<16x256xf32>
    %8 = arith.addf %5, %7 : vector<16x256xf32>
    %cst_9 = arith.constant 0.000000e+00 : f32
    %9 = vector.broadcast %cst_9 : f32 to vector<16x256xf32>
    %10 = arith.maximumf %8, %9 : vector<16x256xf32>
    %c0_10 = arith.constant 0 : index
    %c0_11 = arith.constant 0 : index
    %11 = vector.load %arg6[%c0_10, %c0_11] : memref<16x16xf32, #tpu.memory_space<vmem>>, vector<16x16xf32>
    %cst_12 = arith.constant dense<0.000000e+00> : vector<16x256xf32>
    %12 = tpu.matmul %11, %10, %cst_12 {dimension_numbers = #tpu.dot_dimension_numbers<[1], [0], [0], [1], [0, 0, 1, 1], [], []>} : vector<16x16xf32>, vector<16x256xf32>, vector<16x256xf32> -> vector<16x256xf32>
    %c0_13 = arith.constant 0 : index
    %c0_14 = arith.constant 0 : index
    %13 = vector.load %arg7[%c0_13, %c0_14] : memref<16x1xf32, #tpu.memory_space<vmem>>, vector<16x1xf32>
    %14 = vector.broadcast %13 : vector<16x1xf32> to vector<16x256xf32>
    %15 = arith.addf %12, %14 : vector<16x256xf32>
    %cst_15 = arith.constant 0.000000e+00 : f32
    %16 = vector.broadcast %cst_15 : f32 to vector<16x256xf32>
    %17 = arith.maximumf %15, %16 : vector<16x256xf32>
    %c0_16 = arith.constant 0 : index
    %c0_17 = arith.constant 0 : index
    %18 = vector.load %arg8[%c0_16, %c0_17] : memref<16x32xf32, #tpu.memory_space<vmem>>, vector<16x32xf32>
    %cst_18 = arith.constant dense<0.000000e+00> : vector<16x8xf32>
    %19 = tpu.matmul %18, %3, %cst_18 {dimension_numbers = #tpu.dot_dimension_numbers<[1], [0], [0], [1], [0, 0, 1, 1], [], []>} : vector<16x32xf32>, vector<32x8xf32>, vector<16x8xf32> -> vector<16x8xf32>
    %c0_19 = arith.constant 0 : index
    %c0_20 = arith.constant 0 : index
    %20 = vector.load %arg9[%c0_19, %c0_20] : memref<16x1xf32, #tpu.memory_space<vmem>>, vector<16x1xf32>
    %21 = vector.broadcast %20 : vector<16x1xf32> to vector<16x8xf32>
    %22 = arith.addf %19, %21 : vector<16x8xf32>
    %cst_21 = arith.constant 0.000000e+00 : f32
    %23 = vector.broadcast %cst_21 : f32 to vector<16x8xf32>
    %24 = arith.maximumf %22, %23 : vector<16x8xf32>
    %c0_22 = arith.constant 0 : index
    %c0_23 = arith.constant 0 : index
    %25 = vector.load %arg10[%c0_22, %c0_23] : memref<16x16xf32, #tpu.memory_space<vmem>>, vector<16x16xf32>
    %cst_24 = arith.constant dense<0.000000e+00> : vector<16x8xf32>
    %26 = tpu.matmul %25, %24, %cst_24 {dimension_numbers = #tpu.dot_dimension_numbers<[1], [0], [0], [1], [0, 0, 1, 1], [], []>} : vector<16x16xf32>, vector<16x8xf32>, vector<16x8xf32> -> vector<16x8xf32>
    %c0_25 = arith.constant 0 : index
    %c0_26 = arith.constant 0 : index
    %27 = vector.load %arg11[%c0_25, %c0_26] : memref<16x1xf32, #tpu.memory_space<vmem>>, vector<16x1xf32>
    %28 = vector.broadcast %27 : vector<16x1xf32> to vector<16x8xf32>
    %29 = arith.addf %26, %28 : vector<16x8xf32>
    %cst_27 = arith.constant 0.000000e+00 : f32
    %30 = vector.broadcast %cst_27 : f32 to vector<16x8xf32>
    %31 = arith.maximumf %29, %30 : vector<16x8xf32>
    %c0_28 = arith.constant 0 : index
    %c0_29 = arith.constant 0 : index
    %32 = vector.load %arg12[%c0_28, %c0_29] : memref<16x32xf32, #tpu.memory_space<vmem>>, vector<16x32xf32>
    %cst_30 = arith.constant dense<0.000000e+00> : vector<16x8xf32>
    %33 = tpu.matmul %32, %3, %cst_30 {dimension_numbers = #tpu.dot_dimension_numbers<[1], [0], [0], [1], [0, 0, 1, 1], [], []>} : vector<16x32xf32>, vector<32x8xf32>, vector<16x8xf32> -> vector<16x8xf32>
    %c0_31 = arith.constant 0 : index
    %c0_32 = arith.constant 0 : index
    %34 = vector.load %arg13[%c0_31, %c0_32] : memref<16x1xf32, #tpu.memory_space<vmem>>, vector<16x1xf32>
    %35 = vector.broadcast %34 : vector<16x1xf32> to vector<16x8xf32>
    %36 = arith.addf %33, %35 : vector<16x8xf32>
    %cst_33 = arith.constant 0.000000e+00 : f32
    %37 = vector.broadcast %cst_33 : f32 to vector<16x8xf32>
    %38 = arith.maximumf %36, %37 : vector<16x8xf32>
    %cst_34 = arith.constant dense<0.000000e+00> : vector<8x256xf32>
    %39 = tpu.matmul %31, %17, %cst_34 {dimension_numbers = #tpu.dot_dimension_numbers<[0], [0], [1], [1], [0, 1, 1, 1], [], []>} : vector<16x8xf32>, vector<16x256xf32>, vector<8x256xf32> -> vector<8x256xf32>
    %cst_35 = arith.constant dense<0xFF800000> : vector<256xf32>
    %40 = vector.multi_reduction <maximumf>, %39, %cst_35 [0] : vector<8x256xf32> to vector<256xf32>
    %41 = vector.shape_cast %40 : vector<256xf32> to vector<1x256xf32>
    %42 = vector.broadcast %41 : vector<1x256xf32> to vector<8x256xf32>
    %43 = arith.subf %39, %42 : vector<8x256xf32>
    %44 = math.exp %43 : vector<8x256xf32>
    %cst_36 = arith.constant dense<0.000000e+00> : vector<256xf32>
    %45 = vector.multi_reduction <add>, %44, %cst_36 [0] : vector<8x256xf32> to vector<256xf32>
    %46 = vector.shape_cast %45 : vector<256xf32> to vector<1x256xf32>
    %47 = tpu.reciprocal %46 {approx = true} : vector<1x256xf32> -> vector<1x256xf32>
    %48 = vector.broadcast %47 : vector<1x256xf32> to vector<8x256xf32>
    %49 = arith.mulf %44, %48 : vector<8x256xf32>
    %cst_37 = arith.constant dense<0.000000e+00> : vector<16x256xf32>
    %50 = tpu.matmul %38, %49, %cst_37 {dimension_numbers = #tpu.dot_dimension_numbers<[1], [0], [0], [1], [0, 0, 1, 1], [], []>} : vector<16x8xf32>, vector<8x256xf32>, vector<16x256xf32> -> vector<16x256xf32>
    %c0_38 = arith.constant 0 : index
    %c0_39 = arith.constant 0 : index
    %51 = vector.load %arg14[%c0_38, %c0_39] : memref<32x16xf32, #tpu.memory_space<vmem>>, vector<32x16xf32>
    %cst_40 = arith.constant dense<0.000000e+00> : vector<32x256xf32>
    %52 = tpu.matmul %51, %50, %cst_40 {dimension_numbers = #tpu.dot_dimension_numbers<[1], [0], [0], [1], [0, 0, 1, 1], [], []>} : vector<32x16xf32>, vector<16x256xf32>, vector<32x256xf32> -> vector<32x256xf32>
    %c0_41 = arith.constant 0 : index
    %c0_42 = arith.constant 0 : index
    %53 = vector.load %arg15[%c0_41, %c0_42] : memref<32x1xf32, #tpu.memory_space<vmem>>, vector<32x1xf32>
    %54 = vector.broadcast %53 : vector<32x1xf32> to vector<32x256xf32>
    %55 = arith.addf %52, %54 : vector<32x256xf32>
    %cst_43 = arith.constant 0.000000e+00 : f32
    %56 = vector.broadcast %cst_43 : f32 to vector<32x256xf32>
    %57 = arith.maximumf %55, %56 : vector<32x256xf32>
    %c0_44 = arith.constant 0 : index
    %c0_45 = arith.constant 0 : index
    %c0_46 = arith.constant 0 : index
    %58 = vector.load %arg16[%c0_44, %c0_45, %c0_46] : memref<1x32x256xf32, #tpu.memory_space<vmem>>, vector<1x32x256xf32>
    %59 = vector.shape_cast %58 : vector<1x32x256xf32> to vector<32x256xf32>
    %60 = vector.shape_cast %57 : vector<32x256xf32> to vector<1x32x256xf32>
    tpu.vector_store %arg16[%c0_44, %c0_45, %c0_46], %60 {strides = array<i32>} : memref<1x32x256xf32, #tpu.memory_space<vmem>>, vector<1x32x256xf32>,
    return
  }
  func.func @transform_0(%arg0: i32, %arg1: i32) -> (i32, i32, i32) {
    %c0_i32 = arith.constant 0 : i32
    %c0_i32_0 = arith.constant 0 : i32
    return %arg0, %c0_i32, %arg1 : i32, i32, i32
  }
  func.func @transform_1(%arg0: i32, %arg1: i32) -> (i32, i32, i32) {
    %c0_i32 = arith.constant 0 : i32
    %c0_i32_0 = arith.constant 0 : i32
    %c0_i32_1 = arith.constant 0 : i32
    return %arg0, %c0_i32, %c0_i32_0 : i32, i32, i32
  }
  func.func @transform_2(%arg0: i32, %arg1: i32) -> (i32, i32) {
    %c0_i32 = arith.constant 0 : i32
    %c0_i32_0 = arith.constant 0 : i32
    %c0_i32_1 = arith.constant 0 : i32
    return %c0_i32, %c0_i32_0 : i32, i32
  }
  func.func @transform_3(%arg0: i32, %arg1: i32) -> (i32, i32) {
    %c0_i32 = arith.constant 0 : i32
    %c0_i32_0 = arith.constant 0 : i32
    %c0_i32_1 = arith.constant 0 : i32
    return %c0_i32, %c0_i32_0 : i32, i32
  }
  func.func @transform_4(%arg0: i32, %arg1: i32) -> (i32, i32) {
    %c0_i32 = arith.constant 0 : i32
    %c0_i32_0 = arith.constant 0 : i32
    %c0_i32_1 = arith.constant 0 : i32
    return %c0_i32, %c0_i32_0 : i32, i32
  }
  func.func @transform_5(%arg0: i32, %arg1: i32) -> (i32, i32) {
    %c0_i32 = arith.constant 0 : i32
    %c0_i32_0 = arith.constant 0 : i32
    %c0_i32_1 = arith.constant 0 : i32
    return %c0_i32, %c0_i32_0 : i32, i32
  }
  func.func @transform_6(%arg0: i32, %arg1: i32) -> (i32, i32) {
    %c0_i32 = arith.constant 0 : i32
    %c0_i32_0 = arith.constant 0 : i32
    %c0_i32_1 = arith.constant 0 : i32
    return %c0_i32, %c0_i32_0 : i32, i32
  }
  func.func @transform_7(%arg0: i32, %arg1: i32) -> (i32, i32) {
    %c0_i32 = arith.constant 0 : i32
    %c0_i32_0 = arith.constant 0 : i32
    %c0_i32_1 = arith.constant 0 : i32
    return %c0_i32, %c0_i32_0 : i32, i32
  }
  func.func @transform_8(%arg0: i32, %arg1: i32) -> (i32, i32) {
    %c0_i32 = arith.constant 0 : i32
    %c0_i32_0 = arith.constant 0 : i32
    %c0_i32_1 = arith.constant 0 : i32
    return %c0_i32, %c0_i32_0 : i32, i32
  }
  func.func @transform_9(%arg0: i32, %arg1: i32) -> (i32, i32) {
    %c0_i32 = arith.constant 0 : i32
    %c0_i32_0 = arith.constant 0 : i32
    %c0_i32_1 = arith.constant 0 : i32
    return %c0_i32, %c0_i32_0 : i32, i32
  }
  func.func @transform_10(%arg0: i32, %arg1: i32) -> (i32, i32) {
    %c0_i32 = arith.constant 0 : i32
    %c0_i32_0 = arith.constant 0 : i32
    %c0_i32_1 = arith.constant 0 : i32
    return %c0_i32, %c0_i32_0 : i32, i32
  }
  func.func @transform_11(%arg0: i32, %arg1: i32) -> (i32, i32) {
    %c0_i32 = arith.constant 0 : i32
    %c0_i32_0 = arith.constant 0 : i32
    %c0_i32_1 = arith.constant 0 : i32
    return %c0_i32, %c0_i32_0 : i32, i32
  }
  func.func @transform_12(%arg0: i32, %arg1: i32) -> (i32, i32) {
    %c0_i32 = arith.constant 0 : i32
    %c0_i32_0 = arith.constant 0 : i32
    %c0_i32_1 = arith.constant 0 : i32
    return %c0_i32, %c0_i32_0 : i32, i32
  }
  func.func @transform_13(%arg0: i32, %arg1: i32) -> (i32, i32) {
    %c0_i32 = arith.constant 0 : i32
    %c0_i32_0 = arith.constant 0 : i32
    %c0_i32_1 = arith.constant 0 : i32
    return %c0_i32, %c0_i32_0 : i32, i32
  }
  func.func @transform_14(%arg0: i32, %arg1: i32) -> (i32, i32, i32) {
    %c0_i32 = arith.constant 0 : i32
    %c0_i32_0 = arith.constant 0 : i32
    return %arg0, %c0_i32, %arg1 : i32, i32, i32
  }
}

</mosaic_0001>

<llo_original>
// kernel: tpu_custom_call.1
$region0: #{tpu_custom_call.1}
  #allocation0 [shape = 'u32[]', space=smem, size = 0x4, offset = 0x4, fixed_abs, tag = 'smem constant byte address 0x4 - core index']
  #allocation1 [shape = 'u32[72,128]{1,0:T(1,128)}', space=vmem, size = 0x9000, scoped, tag = 'internal scratch']
  %s0 = inlined_call_operand.hbm [shape: f32[2,32,256], index: 0, kind: input, shape index: {}]
  %s1 = inlined_call_operand.vmem [shape: f32[2,32,8], index: 1, kind: input, shape index: {}]
  %s2 = inlined_call_operand.vmem [shape: f32[16,32], index: 2, kind: input, shape index: {}]
  %s3 = inlined_call_operand.vmem [shape: f32[16,1], index: 3, kind: input, shape index: {}]
  %s4 = inlined_call_operand.vmem [shape: f32[16,16], index: 4, kind: input, shape index: {}]
  %s5 = inlined_call_operand.vmem [shape: f32[16,1], index: 5, kind: input, shape index: {}]
  %s6 = inlined_call_operand.vmem [shape: f32[16,32], index: 6, kind: input, shape index: {}]
  %s7 = inlined_call_operand.vmem [shape: f32[16,1], index: 7, kind: input, shape index: {}]
  %s8 = inlined_call_operand.vmem [shape: f32[16,16], index: 8, kind: input, shape index: {}]
  %s9 = inlined_call_operand.vmem [shape: f32[16,1], index: 9, kind: input, shape index: {}]
  %s10 = inlined_call_operand.vmem [shape: f32[16,32], index: 10, kind: input, shape index: {}]
  %s11 = inlined_call_operand.vmem [shape: f32[16,1], index: 11, kind: input, shape index: {}]
  %s12 = inlined_call_operand.vmem [shape: f32[32,16], index: 12, kind: input, shape index: {}]
  %s13 = inlined_call_operand.vmem [shape: f32[32,1], index: 13, kind: input, shape index: {}]
  %s14 = inlined_call_operand.hbm [shape: f32[2,32,256], index: 14, kind: output, shape index: {}]
  %s15 = sld [smem:[#allocation0]]
  $region93: #{tpu_custom_call.1} parent=0
    _
  %s17 = ssub.s32 1, %s15
  %s18 = scalar_select 0, %s17, %s15
  $region1: #{tpu_custom_call.1} parent=0
    #allocation2 [shape = 'u8[65536]{0}', space=vmem, size = 0x10000, scoped, tag = 'input window, operand 0']
    #allocation3 [shape = 's32[2]{0}', space=sflag, size = 0x8, scoped, tag = 'scoped memory for tpu_custom_call.1']
    #allocation4 [shape = 's32[2]{0}', space=sflag, size = 0x8, scoped, tag = 'scoped memory for tpu_custom_call.1']
    #allocation5 [shape = 'u8[65536]{0}', space=vmem, size = 0x10000, scoped, tag = 'output window, operand 0']
    %19 = vsyncpa [#allocation3], 0
    %s20 = scalar_lea.sflag [#allocation3], 1
    %21 = vsyncpa %s20, 0
    %22 = vsyncpa [#allocation4], 0
    %s23 = scalar_lea.sflag [#allocation4], 1
    %24 = vsyncpa %s23, 0
    loop: start=0, step=1, limit=4
    $region2: #{tpu_custom_call.1} parent=1 // loop_pre_header
      _
    $region3: #{tpu_custom_call.1} parent=1 // loop_header
      %s26 = sphi 0, %s30
      %p27 = scmp.ge.s32.totalorder %s26, 4
      %s33 = sphi 0, %s45
      %s34 = sphi 0, %s41
      %s35 = sphi 0, %s33
      %s36 = sphi 0, %s34
      %s37 = sphi 0, %s35
      %s38 = sphi 0, %s36
      %s50 = sphi 0, %s52
      %s53 = sphi 0, %s50
      %s54 = sphi 0, %s53
      %s70 = sphi 0, %s54
      %s76 = sphi 0, %s78
      %s79 = sphi 0, %s76
      %s80 = sphi 0, %s79
      %s96 = sphi 0, %s80
      %s100 = sphi 0, %s100
      %s102 = sphi 0, %s100
      %s103 = sphi 0, %s102
      %s117 = sphi 0, %s103
      %s121 = sphi 0, %s121
      %s123 = sphi 0, %s121
      %s124 = sphi 0, %s123
      %s138 = sphi 0, %s124
      %s142 = sphi 0, %s142
      %s144 = sphi 0, %s142
      %s145 = sphi 0, %s144
      %s159 = sphi 0, %s145
      %s163 = sphi 0, %s163
      %s165 = sphi 0, %s163
      %s166 = sphi 0, %s165
      %s180 = sphi 0, %s166
      %s184 = sphi 0, %s184
      %s186 = sphi 0, %s184
      %s187 = sphi 0, %s186
      %s201 = sphi 0, %s187
      %s205 = sphi 0, %s205
      %s207 = sphi 0, %s205
      %s208 = sphi 0, %s207
      %s222 = sphi 0, %s208
      %s226 = sphi 0, %s226
      %s228 = sphi 0, %s226
      %s229 = sphi 0, %s228
      %s243 = sphi 0, %s229
      %s247 = sphi 0, %s247
      %s249 = sphi 0, %s247
      %s250 = sphi 0, %s249
      %s264 = sphi 0, %s250
      %s268 = sphi 0, %s268
      %s270 = sphi 0, %s268
      %s271 = sphi 0, %s270
      %s285 = sphi 0, %s271
      %s289 = sphi 0, %s289
      %s291 = sphi 0, %s289
      %s292 = sphi 0, %s291
      %s306 = sphi 0, %s292
      %s310 = sphi 0, %s310
      %s312 = sphi 0, %s310
      %s313 = sphi 0, %s312
      %s327 = sphi 0, %s313
      %s331 = sphi 0, %s331
      %s333 = sphi 0, %s331
      %s334 = sphi 0, %s333
      %s348 = sphi 0, %s334
      %s356 = sphi 0, %s358
      %s359 = sphi 0, %s356
      %s360 = sphi 0, %s359
      %s376 = sphi 0, %s360
    $region4: #{tpu_custom_call.1} parent=1 // loop_header_branch
      %29 = sbr.rel (%p27) target = $region8
    $region5: #{tpu_custom_call.1} parent=1 // loop_body
      %s31 = ssub.s32 %s26, 1
      %s32 = ssub.s32 %s26, 2
      %s39 = sadd.s32 1, %s34
      %p40 = scmp.ge.s32.totalorder %s39, 1
      %s41 = scalar_select %p40, 0, %s39
      %s42 = sadd.s32 1, %s33
      %s43 = scalar_select %p40, %s42, %s33
      %p44 = scmp.ge.s32.totalorder %s43, 2
      %s45 = scalar_select %p44, 0, %s43
      %s46 = ssub.s32 %s33, %s45
      %s47 = ssub.s32 %s34, %s41
      %s48 = sor.u32 %s46, %s47
      %p49 = scmp.eq.s32.totalorder %s48, 0
      %s51 = sadd.s32 %s50, 1
      %s52 = scalar_select %p49, %s50, %s51
      %p55 = pneg %p49
      %p56 = scmp.eq.s32.totalorder %s26, 1
      %p57 = por %p55, %p56
      %p58 = scmp.ne.s32.totalorder %s50, %s53
      %p59 = scmp.eq.s32.totalorder %s26, 0
      %p60 = por %p58, %p59
      %p61 = scmp.ne.s32.totalorder %s50, %s53
      %p62 = scmp.eq.s32.totalorder %s31, 1
      %p63 = por %p61, %p62
      %p64 = scmp.ne.s32.totalorder %s53, %s54
      %p65 = scmp.eq.s32.totalorder %s31, 0
      %p66 = por %p64, %p65
      %p67 = scmp.ne.s32.totalorder %s53, %s54
      %p68 = scmp.eq.s32.totalorder %s32, 1
      %p69 = por %p67, %p68
      %p71 = scmp.ne.s32.totalorder %s54, %s70
      %p72 = scmp.eq.s32.totalorder %s32, 0
      %p73 = por %p71, %p72
      %s74 = ssub.s32 %s33, %s45
      %p75 = scmp.eq.s32.totalorder %s74, 0
      %s77 = sadd.s32 %s76, 1
      %s78 = scalar_select %p75, %s76, %s77
      %p81 = pneg %p75
      %p82 = scmp.eq.s32.totalorder %s26, 1
      %p83 = por %p81, %p82
      %p84 = scmp.ne.s32.totalorder %s76, %s79
      %p85 = scmp.eq.s32.totalorder %s26, 0
      %p86 = por %p84, %p85
      %p87 = scmp.ne.s32.totalorder %s76, %s79
      %p88 = scmp.eq.s32.totalorder %s31, 1
      %p89 = por %p87, %p88
      %p90 = scmp.ne.s32.totalorder %s79, %s80
      %p91 = scmp.eq.s32.totalorder %s31, 0
      %p92 = por %p90, %p91
      %p93 = scmp.ne.s32.totalorder %s79, %s80
      %p94 = scmp.eq.s32.totalorder %s32, 1
      %p95 = por %p93, %p94
      %p97 = scmp.ne.s32.totalorder %s80, %s96
      %p98 = scmp.eq.s32.totalorder %s32, 0
      %p99 = por %p97, %p98
      %s101 = sadd.s32 %s100, 1
      %p104 = scmp.eq.s32.totalorder %s26, 1
      %p105 = scmp.ne.s32.totalorder %s100, %s102
      %p106 = scmp.eq.s32.totalorder %s26, 0
      %p107 = por %p105, %p106
      %p108 = scmp.ne.s32.totalorder %s100, %s102
      %p109 = scmp.eq.s32.totalorder %s31, 1
      %p110 = por %p108, %p109
      %p111 = scmp.ne.s32.totalorder %s102, %s103
      %p112 = scmp.eq.s32.totalorder %s31, 0
      %p113 = por %p111, %p112
      %p114 = scmp.ne.s32.totalorder %s102, %s103
      %p115 = scmp.eq.s32.totalorder %s32, 1
      %p116 = por %p114, %p115
      %p118 = scmp.ne.s32.totalorder %s103, %s117
      %p119 = scmp.eq.s32.totalorder %s32, 0
      %p120 = por %p118, %p119
      %s122 = sadd.s32 %s121, 1
      %p125 = scmp.eq.s32.totalorder %s26, 1
      %p126 = scmp.ne.s32.totalorder %s121, %s123
      %p127 = scmp.eq.s32.totalorder %s26, 0
      %p128 = por %p126, %p127
      %p129 = scmp.ne.s32.totalorder %s121, %s123
      %p130 = scmp.eq.s32.totalorder %s31, 1
      %p131 = por %p129, %p130
      %p132 = scmp.ne.s32.totalorder %s123, %s124
      %p133 = scmp.eq.s32.totalorder %s31, 0
      %p134 = por %p132, %p133
      %p135 = scmp.ne.s32.totalorder %s123, %s124
      %p136 = scmp.eq.s32.totalorder %s32, 1
      %p137 = por %p135, %p136
      %p139 = scmp.ne.s32.totalorder %s124, %s138
      %p140 = scmp.eq.s32.totalorder %s32, 0
      %p141 = por %p139, %p140
      %s143 = sadd.s32 %s142, 1
      %p146 = scmp.eq.s32.totalorder %s26, 1
      %p147 = scmp.ne.s32.totalorder %s142, %s144
      %p148 = scmp.eq.s32.totalorder %s26, 0
      %p149 = por %p147, %p148
      %p150 = scmp.ne.s32.totalorder %s142, %s144
      %p151 = scmp.eq.s32.totalorder %s31, 1
      %p152 = por %p150, %p151
      %p153 = scmp.ne.s32.totalorder %s144, %s145
      %p154 = scmp.eq.s32.totalorder %s31, 0
      %p155 = por %p153, %p154
      %p156 = scmp.ne.s32.totalorder %s144, %s145
      %p157 = scmp.eq.s32.totalorder %s32, 1
      %p158 = por %p156, %p157
      %p160 = scmp.ne.s32.totalorder %s145, %s159
      %p161 = scmp.eq.s32.totalorder %s32, 0
      %p162 = por %p160, %p161
      %s164 = sadd.s32 %s163, 1
      %p167 = scmp.eq.s32.totalorder %s26, 1
      %p168 = scmp.ne.s32.totalorder %s163, %s165
      %p169 = scmp.eq.s32.totalorder %s26, 0
      %p170 = por %p168, %p169
      %p171 = scmp.ne.s32.totalorder %s163, %s165
      %p172 = scmp.eq.s32.totalorder %s31, 1
      %p173 = por %p171, %p172
      %p174 = scmp.ne.s32.totalorder %s165, %s166
      %p175 = scmp.eq.s32.totalorder %s31, 0
      %p176 = por %p174, %p175
      %p177 = scmp.ne.s32.totalorder %s165, %s166
      %p178 = scmp.eq.s32.totalorder %s32, 1
      %p179 = por %p177, %p178
      %p181 = scmp.ne.s32.totalorder %s166, %s180
      %p182 = scmp.eq.s32.totalorder %s32, 0
      %p183 = por %p181, %p182
      %s185 = sadd.s32 %s184, 1
      %p188 = scmp.eq.s32.totalorder %s26, 1
      %p189 = scmp.ne.s32.totalorder %s184, %s186
      %p190 = scmp.eq.s32.totalorder %s26, 0
      %p191 = por %p189, %p190
      %p192 = scmp.ne.s32.totalorder %s184, %s186
      %p193 = scmp.eq.s32.totalorder %s31, 1
      %p194 = por %p192, %p193
      %p195 = scmp.ne.s32.totalorder %s186, %s187
      %p196 = scmp.eq.s32.totalorder %s31, 0
      %p197 = por %p195, %p196
      %p198 = scmp.ne.s32.totalorder %s186, %s187
      %p199 = scmp.eq.s32.totalorder %s32, 1
      %p200 = por %p198, %p199
      %p202 = scmp.ne.s32.totalorder %s187, %s201
      %p203 = scmp.eq.s32.totalorder %s32, 0
      %p204 = por %p202, %p203
      %s206 = sadd.s32 %s205, 1
      %p209 = scmp.eq.s32.totalorder %s26, 1
      %p210 = scmp.ne.s32.totalorder %s205, %s207
      %p211 = scmp.eq.s32.totalorder %s26, 0
      %p212 = por %p210, %p211
      %p213 = scmp.ne.s32.totalorder %s205, %s207
      %p214 = scmp.eq.s32.totalorder %s31, 1
      %p215 = por %p213, %p214
      %p216 = scmp.ne.s32.totalorder %s207, %s208
      %p217 = scmp.eq.s32.totalorder %s31, 0
      %p218 = por %p216, %p217
      %p219 = scmp.ne.s32.totalorder %s207, %s208
      %p220 = scmp.eq.s32.totalorder %s32, 1
      %p221 = por %p219, %p220
      %p223 = scmp.ne.s32.totalorder %s208, %s222
      %p224 = scmp.eq.s32.totalorder %s32, 0
      %p225 = por %p223, %p224
      %s227 = sadd.s32 %s226, 1
      %p230 = scmp.eq.s32.totalorder %s26, 1
      %p231 = scmp.ne.s32.totalorder %s226, %s228
      %p232 = scmp.eq.s32.totalorder %s26, 0
      %p233 = por %p231, %p232
      %p234 = scmp.ne.s32.totalorder %s226, %s228
      %p235 = scmp.eq.s32.totalorder %s31, 1
      %p236 = por %p234, %p235
      %p237 = scmp.ne.s32.totalorder %s228, %s229
      %p238 = scmp.eq.s32.totalorder %s31, 0
      %p239 = por %p237, %p238
      %p240 = scmp.ne.s32.totalorder %s228, %s229
      %p241 = scmp.eq.s32.totalorder %s32, 1
      %p242 = por %p240, %p241
      %p244 = scmp.ne.s32.totalorder %s229, %s243
      %p245 = scmp.eq.s32.totalorder %s32, 0
      %p246 = por %p244, %p245
      %s248 = sadd.s32 %s247, 1
      %p251 = scmp.eq.s32.totalorder %s26, 1
      %p252 = scmp.ne.s32.totalorder %s247, %s249
      %p253 = scmp.eq.s32.totalorder %s26, 0
      %p254 = por %p252, %p253
      %p255 = scmp.ne.s32.totalorder %s247, %s249
      %p256 = scmp.eq.s32.totalorder %s31, 1
      %p257 = por %p255, %p256
      %p258 = scmp.ne.s32.totalorder %s249, %s250
      %p259 = scmp.eq.s32.totalorder %s31, 0
      %p260 = por %p258, %p259
      %p261 = scmp.ne.s32.totalorder %s249, %s250
      %p262 = scmp.eq.s32.totalorder %s32, 1
      %p263 = por %p261, %p262
      %p265 = scmp.ne.s32.totalorder %s250, %s264
      %p266 = scmp.eq.s32.totalorder %s32, 0
      %p267 = por %p265, %p266
      %s269 = sadd.s32 %s268, 1
      %p272 = scmp.eq.s32.totalorder %s26, 1
      %p273 = scmp.ne.s32.totalorder %s268, %s270
      %p274 = scmp.eq.s32.totalorder %s26, 0
      %p275 = por %p273, %p274
      %p276 = scmp.ne.s32.totalorder %s268, %s270
      %p277 = scmp.eq.s32.totalorder %s31, 1
      %p278 = por %p276, %p277
      %p279 = scmp.ne.s32.totalorder %s270, %s271
      %p280 = scmp.eq.s32.totalorder %s31, 0
      %p281 = por %p279, %p280
      %p282 = scmp.ne.s32.totalorder %s270, %s271
      %p283 = scmp.eq.s32.totalorder %s32, 1
      %p284 = por %p282, %p283
      %p286 = scmp.ne.s32.totalorder %s271, %s285
      %p287 = scmp.eq.s32.totalorder %s32, 0
      %p288 = por %p286, %p287
      %s290 = sadd.s32 %s289, 1
      %p293 = scmp.eq.s32.totalorder %s26, 1
      %p294 = scmp.ne.s32.totalorder %s289, %s291
      %p295 = scmp.eq.s32.totalorder %s26, 0
      %p296 = por %p294, %p295
      %p297 = scmp.ne.s32.totalorder %s289, %s291
      %p298 = scmp.eq.s32.totalorder %s31, 1
      %p299 = por %p297, %p298
      %p300 = scmp.ne.s32.totalorder %s291, %s292
      %p301 = scmp.eq.s32.totalorder %s31, 0
      %p302 = por %p300, %p301
      %p303 = scmp.ne.s32.totalorder %s291, %s292
      %p304 = scmp.eq.s32.totalorder %s32, 1
      %p305 = por %p303, %p304
      %p307 = scmp.ne.s32.totalorder %s292, %s306
      %p308 = scmp.eq.s32.totalorder %s32, 0
      %p309 = por %p307, %p308
      %s311 = sadd.s32 %s310, 1
      %p314 = scmp.eq.s32.totalorder %s26, 1
      %p315 = scmp.ne.s32.totalorder %s310, %s312
      %p316 = scmp.eq.s32.totalorder %s26, 0
      %p317 = por %p315, %p316
      %p318 = scmp.ne.s32.totalorder %s310, %s312
      %p319 = scmp.eq.s32.totalorder %s31, 1
      %p320 = por %p318, %p319
      %p321 = scmp.ne.s32.totalorder %s312, %s313
      %p322 = scmp.eq.s32.totalorder %s31, 0
      %p323 = por %p321, %p322
      %p324 = scmp.ne.s32.totalorder %s312, %s313
      %p325 = scmp.eq.s32.totalorder %s32, 1
      %p326 = por %p324, %p325
      %p328 = scmp.ne.s32.totalorder %s313, %s327
      %p329 = scmp.eq.s32.totalorder %s32, 0
      %p330 = por %p328, %p329
      %s332 = sadd.s32 %s331, 1
      %p335 = scmp.eq.s32.totalorder %s26, 1
      %p336 = scmp.ne.s32.totalorder %s331, %s333
      %p337 = scmp.eq.s32.totalorder %s26, 0
      %p338 = por %p336, %p337
      %p339 = scmp.ne.s32.totalorder %s331, %s333
      %p340 = scmp.eq.s32.totalorder %s31, 1
      %p341 = por %p339, %p340
      %p342 = scmp.ne.s32.totalorder %s333, %s334
      %p343 = scmp.eq.s32.totalorder %s31, 0
      %p344 = por %p342, %p343
      %p345 = scmp.ne.s32.totalorder %s333, %s334
      %p346 = scmp.eq.s32.totalorder %s32, 1
      %p347 = por %p345, %p346
      %p349 = scmp.ne.s32.totalorder %s334, %s348
      %p350 = scmp.eq.s32.totalorder %s32, 0
      %p351 = por %p349, %p350
      %s352 = ssub.s32 %s33, %s45
      %s353 = ssub.s32 %s34, %s41
      %s354 = sor.u32 %s352, %s353
      %p355 = scmp.eq.s32.totalorder %s354, 0
      %s357 = sadd.s32 %s356, 1
      %s358 = scalar_select %p355, %s356, %s357
      %p361 = pneg %p355
      %p362 = scmp.eq.s32.totalorder %s26, 1
      %p363 = por %p361, %p362
      %p364 = scmp.ne.s32.totalorder %s356, %s359
      %p365 = scmp.eq.s32.totalorder %s26, 0
      %p366 = por %p364, %p365
      %p367 = scmp.ne.s32.totalorder %s356, %s359
      %p368 = scmp.eq.s32.totalorder %s31, 1
      %p369 = por %p367, %p368
      %p370 = scmp.ne.s32.totalorder %s359, %s360
      %p371 = scmp.eq.s32.totalorder %s31, 0
      %p372 = por %p370, %p371
      %p373 = scmp.ne.s32.totalorder %s359, %s360
      %p374 = scmp.eq.s32.totalorder %s32, 1
      %p375 = por %p373, %p374
      %p377 = scmp.ne.s32.totalorder %s360, %s376
      %p378 = scmp.eq.s32.totalorder %s32, 0
      %p379 = por %p377, %p378
      %p380 = scmp.le.s32.totalorder 1, %s26
      %p381 = scmp.lt.s32.totalorder %s26, 3
      %p382 = pnand %p380, %p381
      %p383 = pneg %p382
      // Predicated region
      $region9: #{tpu_custom_call.1} parent=5 // pred_check
        _
      $region10: #{tpu_custom_call.1} parent=5 // pred_check_branch
        %385 = sbr.rel (%p382) target = $region12
      $region11: #{tpu_custom_call.1} parent=5 // pred_region
        %s386 = ssub.s32 %s26, 1
        // Predicated region
        $region13: #{tpu_custom_call.1} parent=11 // pred_check
          %p387 = pneg %p113
        $region14: #{tpu_custom_call.1} parent=11 // pred_check_branch
          %389 = sbr.rel (%p387) target = $region16
        $region15: #{tpu_custom_call.1} parent=11 // pred_region
          _
        $region16: #{tpu_custom_call.1} parent=11 // pred_fallthru
          _
        // Predicated region
        $region17: #{tpu_custom_call.1} parent=11 // pred_check
          %p390 = pneg %p134
        $region18: #{tpu_custom_call.1} parent=11 // pred_check_branch
          %392 = sbr.rel (%p390) target = $region20
        $region19: #{tpu_custom_call.1} parent=11 // pred_region
          _
        $region20: #{tpu_custom_call.1} parent=11 // pred_fallthru
          _
        // Predicated region
        $region21: #{tpu_custom_call.1} parent=11 // pred_check
          %p393 = pneg %p155
        $region22: #{tpu_custom_call.1} parent=11 // pred_check_branch
          %395 = sbr.rel (%p393) target = $region24
        $region23: #{tpu_custom_call.1} parent=11 // pred_region
          _
        $region24: #{tpu_custom_call.1} parent=11 // pred_fallthru
          _
        // Predicated region
        $region25: #{tpu_custom_call.1} parent=11 // pred_check
          %p396 = pneg %p176
        $region26: #{tpu_custom_call.1} parent=11 // pred_check_branch
          %398 = sbr.rel (%p396) target = $region28
        $region27: #{tpu_custom_call.1} parent=11 // pred_region
          _
        $region28: #{tpu_custom_call.1} parent=11 // pred_fallthru
          _
        // Predicated region
        $region29: #{tpu_custom_call.1} parent=11 // pred_check
          %p399 = pneg %p197
        $region30: #{tpu_custom_call.1} parent=11 // pred_check_branch
          %401 = sbr.rel (%p399) target = $region32
        $region31: #{tpu_custom_call.1} parent=11 // pred_region
          _
        $region32: #{tpu_custom_call.1} parent=11 // pred_fallthru
          _
        // Predicated region
        $region33: #{tpu_custom_call.1} parent=11 // pred_check
          %p402 = pneg %p218
        $region34: #{tpu_custom_call.1} parent=11 // pred_check_branch
          %404 = sbr.rel (%p402) target = $region36
        $region35: #{tpu_custom_call.1} parent=11 // pred_region
          _
        $region36: #{tpu_custom_call.1} parent=11 // pred_fallthru
          _
        // Predicated region
        $region37: #{tpu_custom_call.1} parent=11 // pred_check
          %p405 = pneg %p239
        $region38: #{tpu_custom_call.1} parent=11 // pred_check_branch
          %407 = sbr.rel (%p405) target = $region40
        $region39: #{tpu_custom_call.1} parent=11 // pred_region
          _
        $region40: #{tpu_custom_call.1} parent=11 // pred_fallthru
          _
        // Predicated region
        $region41: #{tpu_custom_call.1} parent=11 // pred_check
          %p408 = pneg %p260
        $region42: #{tpu_custom_call.1} parent=11 // pred_check_branch
          %410 = sbr.rel (%p408) target = $region44
        $region43: #{tpu_custom_call.1} parent=11 // pred_region
          _
        $region44: #{tpu_custom_call.1} parent=11 // pred_fallthru
          _
        // Predicated region
        $region45: #{tpu_custom_call.1} parent=11 // pred_check
          %p411 = pneg %p281
        $region46: #{tpu_custom_call.1} parent=11 // pred_check_branch
          %413 = sbr.rel (%p411) target = $region48
        $region47: #{tpu_custom_call.1} parent=11 // pred_region
          _
        $region48: #{tpu_custom_call.1} parent=11 // pred_fallthru
          _
        // Predicated region
        $region49: #{tpu_custom_call.1} parent=11 // pred_check
          %p414 = pneg %p302
        $region50: #{tpu_custom_call.1} parent=11 // pred_check_branch
          %416 = sbr.rel (%p414) target = $region52
        $region51: #{tpu_custom_call.1} parent=11 // pred_region
          _
        $region52: #{tpu_custom_call.1} parent=11 // pred_fallthru
          _
        // Predicated region
        $region53: #{tpu_custom_call.1} parent=11 // pred_check
          %p417 = pneg %p323
        $region54: #{tpu_custom_call.1} parent=11 // pred_check_branch
          %419 = sbr.rel (%p417) target = $region56
        $region55: #{tpu_custom_call.1} parent=11 // pred_region
          _
        $region56: #{tpu_custom_call.1} parent=11 // pred_fallthru
          _
        // Predicated region
        $region57: #{tpu_custom_call.1} parent=11 // pred_check
          %p420 = pneg %p344
        $region58: #{tpu_custom_call.1} parent=11 // pred_check_branch
          %422 = sbr.rel (%p420) target = $region60
        $region59: #{tpu_custom_call.1} parent=11 // pred_region
          _
        $region60: #{tpu_custom_call.1} parent=11 // pred_fallthru
          _
      $region12: #{tpu_custom_call.1} parent=5 // pred_fallthru
        _
      %p423 = scmp.lt.s32.totalorder %s26, 2
      // Predicated region
      $region61: #{tpu_custom_call.1} parent=5 // pred_check
        %p424 = pneg %p423
      $region62: #{tpu_custom_call.1} parent=5 // pred_check_branch
        %426 = sbr.rel (%p424) target = $region64
      $region63: #{tpu_custom_call.1} parent=5 // pred_region
        // Predicated region
        $region65: #{tpu_custom_call.1} parent=63 // pred_check
          %p427 = pneg %p60
        $region66: #{tpu_custom_call.1} parent=63 // pred_check_branch
          %429 = sbr.rel (%p427) target = $region68
        $region67: #{tpu_custom_call.1} parent=63 // pred_region
          %s430 = sand.u32 %s50, 1
          %s431 = scalar_lea.sflag [#allocation3], %s430
          %s432 = sand.u32 %s50, 1
          %s433 = smul.addr %s432, 64
          %s434 = scalar_lea.vmem [#allocation2], %s433
          %s435 = smul.u32 2, %s34
          %437 = vsyncadd %s431, 0
          %s438 = smul.addr %s33, 8
          %s439 = sadd.s32 %s435, %s438
          %s440 = smul.addr %s439, 8
          %s441 = scalar_lea.hbm %s0, %s440
          %s442 = sshll.u32 %s441, 4
          %s443 = int_to_ptr.hbm [resolvable:$true] %s442
          %s444 = sshll.u32 %s434, 4
          %s445 = int_to_ptr.vmem [resolvable:$true] %s444
          %450 = dma.hbm_to_vmem [thread:$0]  %s443, 1024, %s445, %s431, 256, 256, 16
        $region68: #{tpu_custom_call.1} parent=63 // pred_fallthru
          _
        // Predicated region
        $region69: #{tpu_custom_call.1} parent=63 // pred_check
          %p451 = pneg %p86
        $region70: #{tpu_custom_call.1} parent=63 // pred_check_branch
          %453 = sbr.rel (%p451) target = $region72
        $region71: #{tpu_custom_call.1} parent=63 // pred_region
          %p454 = scmp.lt.s32.totalorder %s33, 1
          %s455 = scalar_select %p454, %s33, 1
          %s456 = smul.addr %s455, 4
          %s457 = smul.addr %s456, 8
          %s458 = scalar_lea.vmem %s1, %s457
        $region72: #{tpu_custom_call.1} parent=63 // pred_fallthru
          _
      $region64: #{tpu_custom_call.1} parent=5 // pred_fallthru
        _
      %p459 = scmp.le.s32.totalorder 1, %s26
      %p460 = scmp.lt.s32.totalorder %s26, 3
      %p461 = pnand %p459, %p460
      %p462 = pneg %p461
      // Predicated region
      $region73: #{tpu_custom_call.1} parent=5 // pred_check
        _
      $region74: #{tpu_custom_call.1} parent=5 // pred_check_branch
        %464 = sbr.rel (%p461) target = $region76
      $region75: #{tpu_custom_call.1} parent=5 // pred_region
        %s465 = ssub.s32 %s26, 1
        %s466 = sand.u32 %s53, 1
        %s467 = scalar_lea.sflag [#allocation3], %s466
        %s468 = sand.u32 %s53, 1
        %s469 = smul.addr %s468, 64
        %s470 = scalar_lea.vmem [#allocation2], %s469
        // Predicated region
        $region77: #{tpu_custom_call.1} parent=75 // pred_check
          %p471 = pneg %p66
        $region78: #{tpu_custom_call.1} parent=75 // pred_check_branch
          %473 = sbr.rel (%p471) target = $region80
        $region79: #{tpu_custom_call.1} parent=75 // pred_region
          %475 = dma.done %s467, 1024
        $region80: #{tpu_custom_call.1} parent=75 // pred_fallthru
          _
        %s476 = sand.u32 %s53, 1
        %s477 = scalar_lea.sflag [#allocation3], %s476
        %s478 = sand.u32 %s53, 1
        %s479 = smul.addr %s478, 64
        %s480 = scalar_lea.vmem [#allocation2], %s479
        %p481 = pneg %p66
        %p482 = pneg %p63
        %p483 = scmp.lt.s32.totalorder %s35, 1
        %s484 = scalar_select %p483, %s35, 1
        %s485 = smul.addr %s484, 4
        %s486 = smul.addr %s485, 8
        %s487 = scalar_lea.vmem %s1, %s486
        %p488 = pneg %p92
        %p489 = pneg %p89
        %p490 = pneg %p113
        %p491 = pneg %p110
        %p492 = pneg %p134
        %p493 = pneg %p131
        %p494 = pneg %p155
        %p495 = pneg %p152
        %p496 = pneg %p176
        %p497 = pneg %p173
        %p498 = pneg %p197
        %p499 = pneg %p194
        %p500 = pneg %p218
        %p501 = pneg %p215
        %p502 = pneg %p239
        %p503 = pneg %p236
        %p504 = pneg %p260
        %p505 = pneg %p257
        %p506 = pneg %p281
        %p507 = pneg %p278
        %p508 = pneg %p302
        %p509 = pneg %p299
        %p510 = pneg %p323
        %p511 = pneg %p320
        %p512 = pneg %p344
        %p513 = pneg %p341
        %p514 = pneg %p372
        %p515 = pneg %p369
        %s516 = sand.u32 %s359, 1
        %s517 = scalar_lea.sflag [#allocation4], %s516
        %s518 = sand.u32 %s359, 1
        %s519 = smul.addr %s518, 64
        %s520 = scalar_lea.vmem [#allocation5], %s519
        %s521 = smul.u32 2, %s36
        %p522 = scmp.lt.s32.totalorder %s35, 1
        %s523 = scalar_select %p522, %s35, 1
        %s524 = smul.addr %s523, 4
        %s525 = smul.addr %s524, 8
        %s526 = scalar_lea.vmem %s1, %s525
        %s527 = smul.u32 2, %s36
        %v528 = vld [vmem:[%s470] sm:$0xff]
        %v529 = vld [vmem:[%s470 + $0x8] sm:$0xff]
        %v530 = vld [vmem:[%s470 + $0x10] sm:$0xff]
        %v531 = vld [vmem:[%s470 + $0x18] sm:$0xff]
        %v532 = vld [vmem:[%s470 + $0x20] sm:$0xff]
        %v533 = vld [vmem:[%s470 + $0x28] sm:$0xff]
        %v534 = vld [vmem:[%s470 + $0x30] sm:$0xff]
        %v535 = vld [vmem:[%s470 + $0x38] sm:$0xff]
        %v536 = vld [vmem:[%s526] sm:$0xff]
        %v537 = vld [vmem:[%s526 + $0x8] sm:$0xff]
        %v538 = vld [vmem:[%s526 + $0x10] sm:$0xff]
        %v539 = vld [vmem:[%s526 + $0x18] sm:$0xff]
        %v540 = vld [vmem:[%s2] sm:$0xff]
        %v541 = vld [vmem:[%s2 + $0x8] sm:$0xff]
        %v542 = vld [vmem:[%s3] sm:$0xff]
        %v543 = vld [vmem:[%s3 + $0x8] sm:$0xff]
        %545 = vset.pattern.permute.xlu0 0
        %546 = vperm.xlu0 %545, %v542
        %v547 = vpop.permute.xlu0 %546
        %550 = vset.pattern.permute.xlu0 0
        %551 = vperm.xlu0 %550, %v543
        %v552 = vpop.permute.xlu0 %551
        %vm554 = vcmask 261120
        %v556 = vsel %vm554, %v540, 0
        %v559 = vsel %vm554, %v541, 0
        %561 = vmatpush.msra.mxu0 0.0
        %562 = vmatpush.msra.mxu0 0.0
        %563 = vmatpush.msra.mxu0 0.0
        %564 = vmatpush.msra.mxu0 0.0
        %565 = vmatpush.msra.mxu0 0.0
        %566 = vmatpush.msra.mxu0 0.0
        %567 = vmatpush.msra.mxu0 0.0
        %568 = vmatpush.msra.mxu0 0.0
        %569 = vmatpush.msra.mxu0 0.0
        %570 = vmatpush.msra.mxu0 0.0
        %571 = vmatpush.msra.mxu0 0.0
        %572 = vmatpush.msra.mxu0 0.0
        %573 = vmatpush.msra.mxu0 %v534
        %574 = vmatpush.msra.mxu0 %v532
        %575 = vmatpush.msra.mxu0 %v530
        %576 = vmatpush.msra.mxu0 %v528
        %577 = vmatmul.f32.gmra.mxu0 %v556
        %v578 = vpop.f32.mrf.mxu0
        %v579 = vadd.f32 %v547, %v578
        %580 = vmatmul.f32.gmra.mxu0 %v559
        %v581 = vpop.f32.mrf.mxu0
        %v582 = vadd.f32 %v552, %v581
        %583 = vdwg.mxu0
        %584 = vmatpush.msra.mxu0 0.0
        %585 = vmatpush.msra.mxu0 0.0
        %586 = vmatpush.msra.mxu0 0.0
        %587 = vmatpush.msra.mxu0 0.0
        %588 = vmatpush.msra.mxu0 0.0
        %589 = vmatpush.msra.mxu0 0.0
        %590 = vmatpush.msra.mxu0 0.0
        %591 = vmatpush.msra.mxu0 0.0
        %592 = vmatpush.msra.mxu0 0.0
        %593 = vmatpush.msra.mxu0 0.0
        %594 = vmatpush.msra.mxu0 0.0
        %595 = vmatpush.msra.mxu0 0.0
        %596 = vmatpush.msra.mxu0 %v535
        %597 = vmatpush.msra.mxu0 %v533
        %598 = vmatpush.msra.mxu0 %v531
        %599 = vmatpush.msra.mxu0 %v529
        %600 = vmatmul.f32.gmra.mxu0 %v556
        %v601 = vpop.f32.mrf.mxu0
        %v602 = vadd.f32 %v547, %v601
        %603 = vmatmul.f32.gmra.mxu0 %v559
        %v604 = vpop.f32.mrf.mxu0
        %v605 = vadd.f32 %v552, %v604
        %606 = vdwg.mxu0
        %v607 = vmax.f32 %v579, 0.0
        %v608 = vmax.f32 %v602, 0.0
        %v609 = vmax.f32 %v582, 0.0
        %v610 = vmax.f32 %v605, 0.0
        %v611 = vld [vmem:[%s4] sm:$0xff]
        %v612 = vld [vmem:[%s4 + $0x8] sm:$0xff]
        %v613 = vld [vmem:[%s5] sm:$0xff]
        %v614 = vld [vmem:[%s5 + $0x8] sm:$0xff]
        %616 = vset.pattern.permute.xlu0 0
        %617 = vperm.xlu0 %616, %v613
        %v618 = vpop.permute.xlu0 %617
        %621 = vset.pattern.permute.xlu0 0
        %622 = vperm.xlu0 %621, %v614
        %v623 = vpop.permute.xlu0 %622
        %vm625 = vcmask 130048
        %v627 = vsel %vm625, %v611, 0
        %v630 = vsel %vm625, %v612, 0
        %632 = vmatpush.msra.mxu0 0.0
        %633 = vmatpush.msra.mxu0 0.0
        %634 = vmatpush.msra.mxu0 0.0
        %635 = vmatpush.msra.mxu0 0.0
        %636 = vmatpush.msra.mxu0 0.0
        %637 = vmatpush.msra.mxu0 0.0
        %638 = vmatpush.msra.mxu0 0.0
        %639 = vmatpush.msra.mxu0 0.0
        %640 = vmatpush.msra.mxu0 0.0
        %641 = vmatpush.msra.mxu0 0.0
        %642 = vmatpush.msra.mxu0 0.0
        %643 = vmatpush.msra.mxu0 0.0
        %644 = vmatpush.msra.mxu0 0.0
        %645 = vmatpush.msra.mxu0 0.0
        %646 = vmatpush.msra.mxu0 %v609
        %647 = vmatpush.msra.mxu0 %v607
        %648 = vmatmul.f32.gmra.mxu0 %v627
        %v649 = vpop.f32.mrf.mxu0
        %v650 = vadd.f32 %v618, %v649
        %651 = vmatmul.f32.gmra.mxu0 %v630
        %v652 = vpop.f32.mrf.mxu0
        %v653 = vadd.f32 %v623, %v652
        %654 = vdwg.mxu0
        %655 = vmatpush.msra.mxu0 0.0
        %656 = vmatpush.msra.mxu0 0.0
        %657 = vmatpush.msra.mxu0 0.0
        %658 = vmatpush.msra.mxu0 0.0
        %659 = vmatpush.msra.mxu0 0.0
        %660 = vmatpush.msra.mxu0 0.0
        %661 = vmatpush.msra.mxu0 0.0
        %662 = vmatpush.msra.mxu0 0.0
        %663 = vmatpush.msra.mxu0 0.0
        %664 = vmatpush.msra.mxu0 0.0
        %665 = vmatpush.msra.mxu0 0.0
        %666 = vmatpush.msra.mxu0 0.0
        %667 = vmatpush.msra.mxu0 0.0
        %668 = vmatpush.msra.mxu0 0.0
        %669 = vmatpush.msra.mxu0 %v610
        %670 = vmatpush.msra.mxu0 %v608
        %671 = vmatmul.f32.gmra.mxu0 %v627
        %v672 = vpop.f32.mrf.mxu0
        %v673 = vadd.f32 %v618, %v672
        %674 = vmatmul.f32.gmra.mxu0 %v630
        %v675 = vpop.f32.mrf.mxu0
        %v676 = vadd.f32 %v623, %v675
        %677 = vdwg.mxu0
        %v678 = vmax.f32 %v650, 0.0
        %v679 = vmax.f32 %v673, 0.0
        %v680 = vmax.f32 %v653, 0.0
        %v681 = vmax.f32 %v676, 0.0
        %v682 = vld [vmem:[%s6] sm:$0xff]
        %v683 = vld [vmem:[%s6 + $0x8] sm:$0xff]
        %v684 = vld [vmem:[%s7] sm:$0xff]
        %v685 = vld [vmem:[%s7 + $0x8] sm:$0xff]
        %687 = vset.pattern.permute.xlu0 0
        %688 = vperm.xlu0 %687, %v684
        %v689 = vpop.permute.xlu0 %688
        %692 = vset.pattern.permute.xlu0 0
        %693 = vperm.xlu0 %692, %v685
        %v694 = vpop.permute.xlu0 %693
        %v697 = vsel %vm554, %v682, 0
        %v700 = vsel %vm554, %v683, 0
        %702 = vmatpush.msra.mxu0 0.0
        %703 = vmatpush.msra.mxu0 0.0
        %704 = vmatpush.msra.mxu0 0.0
        %705 = vmatpush.msra.mxu0 0.0
        %706 = vmatpush.msra.mxu0 0.0
        %707 = vmatpush.msra.mxu0 0.0
        %708 = vmatpush.msra.mxu0 0.0
        %709 = vmatpush.msra.mxu0 0.0
        %710 = vmatpush.msra.mxu0 0.0
        %711 = vmatpush.msra.mxu0 0.0
        %712 = vmatpush.msra.mxu0 0.0
        %713 = vmatpush.msra.mxu0 0.0
        %714 = vmatpush.msra.mxu0 %v539
        %715 = vmatpush.msra.mxu0 %v538
        %716 = vmatpush.msra.mxu0 %v537
        %717 = vmatpush.msra.mxu0 %v536
        %718 = vmatmul.f32.gmra.mxu0 %v697
        %v719 = vpop.f32.mrf.mxu0
        %v720 = vadd.f32 %v689, %v719
        %721 = vmatmul.f32.gmra.mxu0 %v700
        %v722 = vpop.f32.mrf.mxu0
        %v723 = vadd.f32 %v694, %v722
        %724 = vdwg.mxu0
        %v725 = vmax.f32 %v720, 0.0
        %v726 = vmax.f32 %v723, 0.0
        %v727 = vld [vmem:[%s8] sm:$0xff]
        %v728 = vld [vmem:[%s8 + $0x8] sm:$0xff]
        %v729 = vld [vmem:[%s9] sm:$0xff]
        %v730 = vld [vmem:[%s9 + $0x8] sm:$0xff]
        %732 = vset.pattern.permute.xlu0 0
        %733 = vperm.xlu0 %732, %v729
        %v734 = vpop.permute.xlu0 %733
        %737 = vset.pattern.permute.xlu0 0
        %738 = vperm.xlu0 %737, %v730
        %v739 = vpop.permute.xlu0 %738
        %v742 = vsel %vm625, %v727, 0
        %v745 = vsel %vm625, %v728, 0
        %747 = vmatpush.msra.mxu0 0.0
        %748 = vmatpush.msra.mxu0 0.0
        %749 = vmatpush.msra.mxu0 0.0
        %750 = vmatpush.msra.mxu0 0.0
        %751 = vmatpush.msra.mxu0 0.0
        %752 = vmatpush.msra.mxu0 0.0
        %753 = vmatpush.msra.mxu0 0.0
        %754 = vmatpush.msra.mxu0 0.0
        %755 = vmatpush.msra.mxu0 0.0
        %756 = vmatpush.msra.mxu0 0.0
        %757 = vmatpush.msra.mxu0 0.0
        %758 = vmatpush.msra.mxu0 0.0
        %759 = vmatpush.msra.mxu0 0.0
        %760 = vmatpush.msra.mxu0 0.0
        %761 = vmatpush.msra.mxu0 %v726
        %762 = vmatpush.msra.mxu0 %v725
        %763 = vmatmul.f32.gmra.mxu0 %v742
        %v764 = vpop.f32.mrf.mxu0
        %v765 = vadd.f32 %v734, %v764
        %766 = vmatmul.f32.gmra.mxu0 %v745
        %v767 = vpop.f32.mrf.mxu0
        %v768 = vadd.f32 %v739, %v767
        %769 = vdwg.mxu0
        %v770 = vmax.f32 %v765, 0.0
        %v771 = vmax.f32 %v768, 0.0
        %v772 = vld [vmem:[%s10] sm:$0xff]
        %v773 = vld [vmem:[%s10 + $0x8] sm:$0xff]
        %v774 = vld [vmem:[%s11] sm:$0xff]
        %v775 = vld [vmem:[%s11 + $0x8] sm:$0xff]
        %777 = vset.pattern.permute.xlu0 0
        %778 = vperm.xlu0 %777, %v774
        %v779 = vpop.permute.xlu0 %778
        %782 = vset.pattern.permute.xlu0 0
        %783 = vperm.xlu0 %782, %v775
        %v784 = vpop.permute.xlu0 %783
        %v787 = vsel %vm554, %v772, 0
        %v790 = vsel %vm554, %v773, 0
        %792 = vmatpush.msra.mxu0 0.0
        %793 = vmatpush.msra.mxu0 0.0
        %794 = vmatpush.msra.mxu0 0.0
        %795 = vmatpush.msra.mxu0 0.0
        %796 = vmatpush.msra.mxu0 0.0
        %797 = vmatpush.msra.mxu0 0.0
        %798 = vmatpush.msra.mxu0 0.0
        %799 = vmatpush.msra.mxu0 0.0
        %800 = vmatpush.msra.mxu0 0.0
        %801 = vmatpush.msra.mxu0 0.0
        %802 = vmatpush.msra.mxu0 0.0
        %803 = vmatpush.msra.mxu0 0.0
        %804 = vmatpush.msra.mxu0 %v539
        %805 = vmatpush.msra.mxu0 %v538
        %806 = vmatpush.msra.mxu0 %v537
        %807 = vmatpush.msra.mxu0 %v536
        %808 = vmatmul.f32.gmra.mxu0 %v787
        %v809 = vpop.f32.mrf.mxu0
        %v810 = vadd.f32 %v779, %v809
        %811 = vmatmul.f32.gmra.mxu0 %v790
        %v812 = vpop.f32.mrf.mxu0
        %v813 = vadd.f32 %v784, %v812
        %814 = vdwg.mxu0
        %v815 = vmax.f32 %v810, 0.0
        %v816 = vmax.f32 %v813, 0.0
        %817 = vxpose.xlu0.b32.start [1/16] %v770, 128
        %818 = vxpose.xlu0.b32.cont [2/16] %v771, 128
        %819 = vxpose.xlu0.b32.cont [3/16] 0.0, 128
        %820 = vxpose.xlu0.b32.cont [4/16] 0.0, 128
        %821 = vxpose.xlu0.b32.cont [5/16] 0.0, 128
        %822 = vxpose.xlu0.b32.cont [6/16] 0.0, 128
        %823 = vxpose.xlu0.b32.cont [7/16] 0.0, 128
        %824 = vxpose.xlu0.b32.cont [8/16] 0.0, 128
        %825 = vxpose.xlu0.b32.cont [9/16] 0.0, 128
        %826 = vxpose.xlu0.b32.cont [10/16] 0.0, 128
        %827 = vxpose.xlu0.b32.cont [11/16] 0.0, 128
        %828 = vxpose.xlu0.b32.cont [12/16] 0.0, 128
        %829 = vxpose.xlu0.b32.cont [13/16] 0.0, 128
        %830 = vxpose.xlu0.b32.cont [14/16] 0.0, 128
        %831 = vxpose.xlu0.b32.cont [15/16] 0.0, 128
        %832 = vxpose.xlu0.b32.end [16/16] 0.0, 128
        %v833 = vpop.trf.xlu0
        %v834 = vpop.trf.xlu0
        %v835 = vpop.trf.xlu0
        %v836 = vpop.trf.xlu0
        %v837 = vpop.trf.xlu0
        %v838 = vpop.trf.xlu0
        %v839 = vpop.trf.xlu0
        %v840 = vpop.trf.xlu0
        %v841 = vpop.trf.xlu0
        %v842 = vpop.trf.xlu0
        %v843 = vpop.trf.xlu0
        %v844 = vpop.trf.xlu0
        %v845 = vpop.trf.xlu0
        %v846 = vpop.trf.xlu0
        %v847 = vpop.trf.xlu0
        %v848 = vpop.trf.xlu0
        %v850 = vsel %vm625, %v833, 0
        %852 = vmatpush.msra.mxu0 0.0
        %853 = vmatpush.msra.mxu0 0.0
        %854 = vmatpush.msra.mxu0 0.0
        %855 = vmatpush.msra.mxu0 0.0
        %856 = vmatpush.msra.mxu0 0.0
        %857 = vmatpush.msra.mxu0 0.0
        %858 = vmatpush.msra.mxu0 0.0
        %859 = vmatpush.msra.mxu0 0.0
        %860 = vmatpush.msra.mxu0 0.0
        %861 = vmatpush.msra.mxu0 0.0
        %862 = vmatpush.msra.mxu0 0.0
        %863 = vmatpush.msra.mxu0 0.0
        %864 = vmatpush.msra.mxu0 0.0
        %865 = vmatpush.msra.mxu0 0.0
        %866 = vmatpush.msra.mxu0 %v680
        %867 = vmatpush.msra.mxu0 %v678
        %868 = vmatmul.f32.gmra.mxu0 %v850
        %v869 = vpop.f32.mrf.mxu0
        %v870 = vadd.f32 0.0, %v869
        %871 = vdwg.mxu0
        %872 = vmatpush.msra.mxu0 0.0
        %873 = vmatpush.msra.mxu0 0.0
        %874 = vmatpush.msra.mxu0 0.0
        %875 = vmatpush.msra.mxu0 0.0
        %876 = vmatpush.msra.mxu0 0.0
        %877 = vmatpush.msra.mxu0 0.0
        %878 = vmatpush.msra.mxu0 0.0
        %879 = vmatpush.msra.mxu0 0.0
        %880 = vmatpush.msra.mxu0 0.0
        %881 = vmatpush.msra.mxu0 0.0
        %882 = vmatpush.msra.mxu0 0.0
        %883 = vmatpush.msra.mxu0 0.0
        %884 = vmatpush.msra.mxu0 0.0
        %885 = vmatpush.msra.mxu0 0.0
        %886 = vmatpush.msra.mxu0 %v681
        %887 = vmatpush.msra.mxu0 %v679
        %888 = vmatmul.f32.gmra.mxu0 %v850
        %v889 = vpop.f32.mrf.mxu0
        %v890 = vadd.f32 0.0, %v889
        %891 = vdwg.mxu0
        %v892 = vrot.slane %v870, 4
        %v893 = vmax.f32 %v870, %v892
        %v894 = vrot.slane %v893, 2
        %v895 = vmax.f32 %v893, %v894
        %v896 = vrot.slane %v895, 1
        %v897 = vmax.f32 %v895, %v896
        %v898 = vrot.slane %v890, 4
        %v899 = vmax.f32 %v890, %v898
        %v900 = vrot.slane %v899, 2
        %v901 = vmax.f32 %v899, %v900
        %v902 = vrot.slane %v901, 1
        %v903 = vmax.f32 %v901, %v902
        %v904 = vsub.f32 %v870, %v897
        %v905 = vsub.f32 %v890, %v903
        %v906 = vmul.f32 %v904, 1.442695
        %v907 = vpow.pop %v906
        %v908 = vmul.f32 %v905, 1.442695
        %v909 = vpow.pop %v908
        %v910 = vrot.slane %v907, 4
        %v911 = vadd.f32 %v907, %v910
        %v912 = vrot.slane %v911, 2
        %v913 = vadd.f32 %v911, %v912
        %v914 = vrot.slane %v913, 1
        %v915 = vadd.f32 %v913, %v914
        %v916 = vrot.slane %v909, 4
        %v917 = vadd.f32 %v909, %v916
        %v918 = vrot.slane %v917, 2
        %v919 = vadd.f32 %v917, %v918
        %v920 = vrot.slane %v919, 1
        %v921 = vadd.f32 %v919, %v920
        %v922 = vrcp.pop %v915
        %v923 = vrcp.pop %v921
        %v924 = vmul.f32 %v907, %v922
        %v925 = vmul.f32 %v909, %v923
        %vm926 = vcmask 64512
        %v928 = vsel %vm926, %v815, 0
        %v931 = vsel %vm926, %v816, 0
        %933 = vmatpush.msra.mxu0 0.0
        %934 = vmatpush.msra.mxu0 0.0
        %935 = vmatpush.msra.mxu0 0.0
        %936 = vmatpush.msra.mxu0 0.0
        %937 = vmatpush.msra.mxu0 0.0
        %938 = vmatpush.msra.mxu0 0.0
        %939 = vmatpush.msra.mxu0 0.0
        %940 = vmatpush.msra.mxu0 0.0
        %941 = vmatpush.msra.mxu0 0.0
        %942 = vmatpush.msra.mxu0 0.0
        %943 = vmatpush.msra.mxu0 0.0
        %944 = vmatpush.msra.mxu0 0.0
        %945 = vmatpush.msra.mxu0 0.0
        %946 = vmatpush.msra.mxu0 0.0
        %947 = vmatpush.msra.mxu0 0.0
        %948 = vmatpush.msra.mxu0 %v924
        %949 = vmatmul.f32.gmra.mxu0 %v928
        %v950 = vpop.f32.mrf.mxu0
        %v951 = vadd.f32 0.0, %v950
        %952 = vmatmul.f32.gmra.mxu0 %v931
        %v953 = vpop.f32.mrf.mxu0
        %v954 = vadd.f32 0.0, %v953
        %955 = vdwg.mxu0
        %956 = vmatpush.msra.mxu0 0.0
        %957 = vmatpush.msra.mxu0 0.0
        %958 = vmatpush.msra.mxu0 0.0
        %959 = vmatpush.msra.mxu0 0.0
        %960 = vmatpush.msra.mxu0 0.0
        %961 = vmatpush.msra.mxu0 0.0
        %962 = vmatpush.msra.mxu0 0.0
        %963 = vmatpush.msra.mxu0 0.0
        %964 = vmatpush.msra.mxu0 0.0
        %965 = vmatpush.msra.mxu0 0.0
        %966 = vmatpush.msra.mxu0 0.0
        %967 = vmatpush.msra.mxu0 0.0
        %968 = vmatpush.msra.mxu0 0.0
        %969 = vmatpush.msra.mxu0 0.0
        %970 = vmatpush.msra.mxu0 0.0
        %971 = vmatpush.msra.mxu0 %v925
        %972 = vmatmul.f32.gmra.mxu0 %v928
        %v973 = vpop.f32.mrf.mxu0
        %v974 = vadd.f32 0.0, %v973
        %975 = vmatmul.f32.gmra.mxu0 %v931
        %v976 = vpop.f32.mrf.mxu0
        %v977 = vadd.f32 0.0, %v976
        %978 = vdwg.mxu0
        %v979 = vld [vmem:[%s12] sm:$0xff]
        %v980 = vld [vmem:[%s12 + $0x8] sm:$0xff]
        %v981 = vld [vmem:[%s12 + $0x10] sm:$0xff]
        %v982 = vld [vmem:[%s12 + $0x18] sm:$0xff]
        %v983 = vld [vmem:[%s13] sm:$0xff]
        %v984 = vld [vmem:[%s13 + $0x8] sm:$0xff]
        %v985 = vld [vmem:[%s13 + $0x10] sm:$0xff]
        %v986 = vld [vmem:[%s13 + $0x18] sm:$0xff]
        %988 = vset.pattern.permute.xlu0 0
        %989 = vperm.xlu0 %988, %v983
        %v990 = vpop.permute.xlu0 %989
        %993 = vset.pattern.permute.xlu0 0
        %994 = vperm.xlu0 %993, %v984
        %v995 = vpop.permute.xlu0 %994
        %998 = vset.pattern.permute.xlu0 0
        %999 = vperm.xlu0 %998, %v985
        %v1000 = vpop.permute.xlu0 %999
        %1003 = vset.pattern.permute.xlu0 0
        %1004 = vperm.xlu0 %1003, %v986
        %v1005 = vpop.permute.xlu0 %1004
        %v1008 = vsel %vm625, %v979, 0
        %v1011 = vsel %vm625, %v980, 0
        %v1014 = vsel %vm625, %v981, 0
        %v1017 = vsel %vm625, %v982, 0
        %1019 = vmatpush.msra.mxu0 0.0
        %1020 = vmatpush.msra.mxu0 0.0
        %1021 = vmatpush.msra.mxu0 0.0
        %1022 = vmatpush.msra.mxu0 0.0
        %1023 = vmatpush.msra.mxu0 0.0
        %1024 = vmatpush.msra.mxu0 0.0
        %1025 = vmatpush.msra.mxu0 0.0
        %1026 = vmatpush.msra.mxu0 0.0
        %1027 = vmatpush.msra.mxu0 0.0
        %1028 = vmatpush.msra.mxu0 0.0
        %1029 = vmatpush.msra.mxu0 0.0
        %1030 = vmatpush.msra.mxu0 0.0
        %1031 = vmatpush.msra.mxu0 0.0
        %1032 = vmatpush.msra.mxu0 0.0
        %1033 = vmatpush.msra.mxu0 %v954
        %1034 = vmatpush.msra.mxu0 %v951
        %1035 = vmatmul.f32.gmra.mxu0 %v1008
        %v1036 = vpop.f32.mrf.mxu0
        %v1037 = vadd.f32 %v990, %v1036
        %1038 = vmatmul.f32.gmra.mxu0 %v1011
        %v1039 = vpop.f32.mrf.mxu0
        %v1040 = vadd.f32 %v995, %v1039
        %1041 = vmatmul.f32.gmra.mxu0 %v1014
        %v1042 = vpop.f32.mrf.mxu0
        %v1043 = vadd.f32 %v1000, %v1042
        %1044 = vmatmul.f32.gmra.mxu0 %v1017
        %v1045 = vpop.f32.mrf.mxu0
        %v1046 = vadd.f32 %v1005, %v1045
        %1047 = vdwg.mxu0
        %1048 = vmatpush.msra.mxu0 0.0
        %1049 = vmatpush.msra.mxu0 0.0
        %1050 = vmatpush.msra.mxu0 0.0
        %1051 = vmatpush.msra.mxu0 0.0
        %1052 = vmatpush.msra.mxu0 0.0
        %1053 = vmatpush.msra.mxu0 0.0
        %1054 = vmatpush.msra.mxu0 0.0
        %1055 = vmatpush.msra.mxu0 0.0
        %1056 = vmatpush.msra.mxu0 0.0
        %1057 = vmatpush.msra.mxu0 0.0
        %1058 = vmatpush.msra.mxu0 0.0
        %1059 = vmatpush.msra.mxu0 0.0
        %1060 = vmatpush.msra.mxu0 0.0
        %1061 = vmatpush.msra.mxu0 0.0
        %1062 = vmatpush.msra.mxu0 %v977
        %1063 = vmatpush.msra.mxu0 %v974
        %1064 = vmatmul.f32.gmra.mxu0 %v1008
        %v1065 = vpop.f32.mrf.mxu0
        %v1066 = vadd.f32 %v990, %v1065
        %1067 = vmatmul.f32.gmra.mxu0 %v1011
        %v1068 = vpop.f32.mrf.mxu0
        %v1069 = vadd.f32 %v995, %v1068
        %1070 = vmatmul.f32.gmra.mxu0 %v1014
        %v1071 = vpop.f32.mrf.mxu0
        %v1072 = vadd.f32 %v1000, %v1071
        %1073 = vmatmul.f32.gmra.mxu0 %v1017
        %v1074 = vpop.f32.mrf.mxu0
        %v1075 = vadd.f32 %v1005, %v1074
        %1076 = vdwg.mxu0
        %v1077 = vmax.f32 %v1037, 0.0
        %v1078 = vmax.f32 %v1066, 0.0
        %v1079 = vmax.f32 %v1040, 0.0
        %v1080 = vmax.f32 %v1069, 0.0
        %v1081 = vmax.f32 %v1043, 0.0
        %v1082 = vmax.f32 %v1072, 0.0
        %v1083 = vmax.f32 %v1046, 0.0
        %v1084 = vmax.f32 %v1075, 0.0
        %1085 = vst [vmem:[%s520] sm:$0xff] %v1077
        %1086 = vst [vmem:[%s520 + $0x8] sm:$0xff] %v1078
        %1087 = vst [vmem:[%s520 + $0x10] sm:$0xff] %v1079
        %1088 = vst [vmem:[%s520 + $0x18] sm:$0xff] %v1080
        %1089 = vst [vmem:[%s520 + $0x20] sm:$0xff] %v1081
        %1090 = vst [vmem:[%s520 + $0x28] sm:$0xff] %v1082
        %1091 = vst [vmem:[%s520 + $0x30] sm:$0xff] %v1083
        %1092 = vst [vmem:[%s520 + $0x38] sm:$0xff] %v1084
        %s1093 = sand.u32 %s359, 1
        %s1094 = scalar_lea.sflag [#allocation4], %s1093
        %s1095 = sand.u32 %s359, 1
        %s1096 = smul.addr %s1095, 64
        %s1097 = scalar_lea.vmem [#allocation5], %s1096
        // Predicated region
        $region81: #{tpu_custom_call.1} parent=75 // pred_check
          %p1098 = pneg %p369
        $region82: #{tpu_custom_call.1} parent=75 // pred_check_branch
          %1100 = sbr.rel (%p1098) target = $region84
        $region83: #{tpu_custom_call.1} parent=75 // pred_region
          %s1101 = smul.u32 2, %s36
          %1103 = vsyncadd %s1094, 0
          %s1104 = smul.addr %s35, 8
          %s1105 = sadd.s32 %s1101, %s1104
          %s1106 = smul.addr %s1105, 8
          %s1107 = scalar_lea.hbm %s14, %s1106
          %s1108 = sshll.u32 %s1097, 4
          %s1109 = int_to_ptr.vmem [resolvable:$true] %s1108
          %s1110 = sshll.u32 %s1107, 4
          %s1111 = int_to_ptr.hbm [resolvable:$true] %s1110
          %1116 = dma.vmem_to_hbm [thread:$0]  %s1109, 1024, %s1111, %s1094, 256, 256, 16
        $region84: #{tpu_custom_call.1} parent=75 // pred_fallthru
          _
      $region76: #{tpu_custom_call.1} parent=5 // pred_fallthru
        _
      %p1117 = scmp.le.s32.totalorder 2, %s26
      // Predicated region
      $region85: #{tpu_custom_call.1} parent=5 // pred_check
        %p1118 = pneg %p1117
      $region86: #{tpu_custom_call.1} parent=5 // pred_check_branch
        %1120 = sbr.rel (%p1118) target = $region88
      $region87: #{tpu_custom_call.1} parent=5 // pred_region
        %s1121 = ssub.s32 %s26, 2
        // Predicated region
        $region89: #{tpu_custom_call.1} parent=87 // pred_check
          %p1122 = pneg %p375
        $region90: #{tpu_custom_call.1} parent=87 // pred_check_branch
          %1124 = sbr.rel (%p1122) target = $region92
        $region91: #{tpu_custom_call.1} parent=87 // pred_region
          %s1125 = sand.u32 %s360, 1
          %s1126 = scalar_lea.sflag [#allocation4], %s1125
          %s1127 = sand.u32 %s360, 1
          %s1128 = smul.addr %s1127, 64
          %s1129 = scalar_lea.vmem [#allocation5], %s1128
          %1131 = dma.done %s1126, 1024
        $region92: #{tpu_custom_call.1} parent=87 // pred_fallthru
          _
      $region88: #{tpu_custom_call.1} parent=5 // pred_fallthru
        _
    $region6: #{tpu_custom_call.1} parent=1 // loop_footer
      %s30 = sadd.s32 1, %s26
    $region7: #{tpu_custom_call.1} parent=1 // loop_footer_branch
      %25 = sbr.rel target = $region3
    $region8: #{tpu_custom_call.1} parent=1 // loop_exit
      _
    %1132 = vsyncpa [#allocation3], 1
    %s1133 = scalar_lea.sflag [#allocation3], 1
    %1134 = vsyncpa %s1133, 1
    %1135 = vsyncpa [#allocation4], 1
    %s1136 = scalar_lea.sflag [#allocation4], 1
    %1137 = vsyncpa %s1136, 1

</llo_original>
